<compile_context>
chip_gen: v7x
topology: tpu7x:2x2x1
jax: 0.10.0
libtpu: 0.0.40
codegen_flags: <defaults>
</compile_context>

<pallas_src>
import jax
import jax.numpy as jnp
from jax.experimental import pallas as pl
from jax.experimental.pallas import tpu as pltpu


def _net_kernel(x_ref, p_ref, o_ref):
    # x_ref : (1, TILE_B)   input, batch on lanes
    # p_ref : (25, 4)       packed params; row r = i*5 + j holds
    #                       [w1[i], b1[i], w2[j], b2[j]]
    # o_ref : (25, TILE_B)  out[r, b] = sigmoid(w2[j]*relu(w1[i]*x[b]+b1[i])+b2[j])
    x = x_ref[...]                                   # (1, TILE_B)
    p = p_ref[...]                                   # (25, 4), loaded once
    w1r = p[:, 0:1]                                  # (25, 1)
    b1r = p[:, 1:2]
    w2r = p[:, 2:3]
    b2r = p[:, 3:4]
    # l1 + ReLU, redundantly evaluated per output row: keeps everything as
    # full-vreg 2-D broadcasts (no 3-D intermediate, no sublane relayout).
    h = jnp.maximum(w1r * x + b1r, 0.0)              # (25, TILE_B)  VPU
    z = w2r * h + b2r                                # (25, TILE_B)  VPU
    # sigmoid(z) == 0.5 * (tanh(z/2) + 1): one EUP transcendental per element.
    o_ref[...] = (0.5 * (jnp.tanh(0.5 * z) + 1.0)).astype(o_ref.dtype)


def _round_up(a, m):
    return ((a + m - 1) // m) * m


def _cdiv(a, b):
    return (a + b - 1) // b


def _choose_tiling(B, tile_b_max):
    """Pick a 128-aligned lane tile and padded total with minimal waste."""
    b_pad = _round_up(max(B, 1), 128)
    num_tiles = _cdiv(b_pad, tile_b_max)
    # >=2 grid steps when possible so "parallel" shards across both TCs (v7x).
    if b_pad >= 256:
        num_tiles = max(num_tiles, 2)
    tile_b = _round_up(_cdiv(b_pad, num_tiles), 128)
    b_total = num_tiles * tile_b
    return tile_b, b_total, num_tiles


def torch_with_activation_forward(x, w1, b1, w2, b2, *, tile_b_max=32768,
                                  out_dtype=jnp.float32, lane_major=False):
    """x: (B, 1) f32. w1, w2: (5, 1) f32 (torch layout). b1, b2: (5,) f32.

    Returns sigmoid(l2(relu(l1(x)))) under the scalar-wise interpretation of l2
    (see module docstring):
      * lane_major=False (default): (B, 5, 5), matching the torch-shaped output
        (costs one extra HBM round trip for the transpose).
      * lane_major=True: kernel-native lane-dense (5, 5, B) layout, out[i, j, b];
        use this when the consumer can fold the transpose into its first op.
    """
    B = x.shape[0]
    x_flat = x.reshape(B).astype(jnp.float32)

    tile_b, b_total, num_tiles = _choose_tiling(B, tile_b_max)
    x_lane = jnp.pad(x_flat, (0, b_total - B)).reshape(1, b_total)

    # Pre-expand the 5-element params into per-output-row columns and pack them
    # into a single (25, 4) array:
    #   row r = i*5 + j -> [w1[i], b1[i], w2[j], b2[j]]
    w1f = w1.reshape(5).astype(jnp.float32)
    b1f = b1.reshape(5).astype(jnp.float32)
    w2f = w2.reshape(5).astype(jnp.float32)
    b2f = b2.reshape(5).astype(jnp.float32)
    params = jnp.stack(
        [jnp.repeat(w1f, 5), jnp.repeat(b1f, 5), jnp.tile(w2f, 5), jnp.tile(b2f, 5)],
        axis=1,
    )  # (25, 4)

    out_bytes = 25 * b_total * jnp.dtype(out_dtype).itemsize
    cost = pl.CostEstimate(
        flops=5 * 25 * b_total,
        transcendentals=25 * b_total,
        bytes_accessed=4 * b_total + out_bytes + 25 * 4 * 4,
    )

    out_lane = pl.pallas_call(
        _net_kernel,
        out_shape=jax.ShapeDtypeStruct((25, b_total), out_dtype),
        grid_spec=pltpu.PrefetchScalarGridSpec(
            num_scalar_prefetch=0,
            grid=(num_tiles,),
            in_specs=[
                pl.BlockSpec((1, tile_b), lambda i: (0, i)),
                pl.BlockSpec((25, 4), lambda i: (0, 0)),      # DMA'd once
            ],
            out_specs=pl.BlockSpec((25, tile_b), lambda i: (0, i)),
        ),
        compiler_params=pltpu.CompilerParams(
            dimension_semantics=("parallel",),
            vmem_limit_bytes=32 << 20,
        ),
        cost_estimate=cost,
    )(x_lane, params)

    out_lane = out_lane[:, :B]                  # strip batch padding
    if lane_major:
        return out_lane.reshape(5, 5, B)        # out[i, j, b], no transpose
    # (25, B) -> (B, 25) -> (B, 5, 5); row r = i*5 + j.
    return out_lane.T.reshape(B, 5, 5)


def _reference(x, w1, b1, w2, b2):
    # Pure-JAX reference of the same scalar-wise semantics.
    h = jnp.maximum(x @ w1.T + b1, 0.0)                               # (B, 5)
    z = h[:, :, None] * w2.reshape(5)[None, None, :] + b2[None, None, :]
    return jax.nn.sigmoid(z)                                          # (B, 5, 5)


if __name__ == "__main__":
    key = jax.random.PRNGKey(0)
    k_x, k_w1, k_b1, k_w2, k_b2 = jax.random.split(key, 5)

    w1 = jax.random.uniform(k_w1, (5, 1), minval=-1.0, maxval=1.0, dtype=jnp.float32)
    b1 = jax.random.uniform(k_b1, (5,), minval=-1.0, maxval=1.0, dtype=jnp.float32)
    w2 = jax.random.uniform(k_w2, (5, 1), minval=-1.0, maxval=1.0, dtype=jnp.float32)
    b2 = jax.random.uniform(k_b2, (5,), minval=-1.0, maxval=1.0, dtype=jnp.float32)

    # Small batch (single grid step).
    B = 8
    x = jax.random.normal(k_x, (B, 1), dtype=jnp.float32)
    out = jax.block_until_ready(torch_with_activation_forward(x, w1, b1, w2, b2))
    ref = _reference(x, w1, b1, w2, b2)
    assert out.shape == (B, 5, 5), out.shape
    assert jnp.allclose(out, ref, atol=1e-5, rtol=1e-5), "mismatch vs reference (B=8)"

    # Slightly larger batch to exercise the multi-tile / 128-padding path and
    # the lane-major (transpose-free) output layout.
    B2 = 300
    x2 = jax.random.normal(k_x, (B2, 1), dtype=jnp.float32)
    out2 = jax.block_until_ready(
        torch_with_activation_forward(x2, w1, b1, w2, b2, lane_major=True))
    ref2 = _reference(x2, w1, b1, w2, b2)
    assert out2.shape == (5, 5, B2), out2.shape
    assert jnp.allclose(jnp.transpose(out2, (2, 0, 1)), ref2, atol=1e-5, rtol=1e-5), \
        "mismatch vs reference (B=300, lane_major)"

    print("KERNEL_OK")
</pallas_src>

<mosaic_0001>
module attributes {stable_mosaic.version = 11 : i64} {
  func.func @_net_kernel(%arg0: i32, %arg1: memref<1x128xf32, #tpu.memory_space<vmem>>, %arg2: memref<25x4xf32, #tpu.memory_space<vmem>>, %arg3: memref<25x128xf32, #tpu.memory_space<vmem>>) attributes {dimension_semantics = [#tpu.dimension_semantics<parallel>], iteration_bounds = array<i64: 1>, scalar_prefetch = 0 : i64, scratch_operands = 0 : i64, tpu.core_type = #tpu.core_type<tc>, window_params = [{transform_indices = @transform_0, window_bounds = array<i64: 1, 128>}, {pipeline_mode = #tpu.pipeline_mode<synchronous>, transform_indices = @transform_1, window_bounds = array<i64: 25, 4>}, {transform_indices = @transform_2, window_bounds = array<i64: 25, 128>}]} {
    %c0 = arith.constant 0 : index
    %c0_0 = arith.constant 0 : index
    %0 = vector.load %arg1[%c0, %c0_0] : memref<1x128xf32, #tpu.memory_space<vmem>>, vector<1x128xf32>
    %c0_1 = arith.constant 0 : index
    %c0_2 = arith.constant 0 : index
    %1 = vector.load %arg2[%c0_1, %c0_2] : memref<25x4xf32, #tpu.memory_space<vmem>>, vector<25x4xf32>
    %2 = vector.extract_strided_slice %1 {offsets = [0, 0], sizes = [25, 1], strides = [1, 1]} : vector<25x4xf32> to vector<25x1xf32>
    %3 = vector.extract_strided_slice %1 {offsets = [0, 1], sizes = [25, 1], strides = [1, 1]} : vector<25x4xf32> to vector<25x1xf32>
    %4 = vector.extract_strided_slice %1 {offsets = [0, 2], sizes = [25, 1], strides = [1, 1]} : vector<25x4xf32> to vector<25x1xf32>
    %5 = vector.extract_strided_slice %1 {offsets = [0, 3], sizes = [25, 1], strides = [1, 1]} : vector<25x4xf32> to vector<25x1xf32>
    %6 = vector.broadcast %2 : vector<25x1xf32> to vector<25x128xf32>
    %7 = vector.broadcast %0 : vector<1x128xf32> to vector<25x128xf32>
    %8 = arith.mulf %6, %7 : vector<25x128xf32>
    %9 = vector.broadcast %3 : vector<25x1xf32> to vector<25x128xf32>
    %10 = arith.addf %8, %9 : vector<25x128xf32>
    %cst = arith.constant 0.000000e+00 : f32
    %11 = vector.broadcast %cst : f32 to vector<25x128xf32>
    %12 = arith.maximumf %10, %11 : vector<25x128xf32>
    %13 = vector.broadcast %4 : vector<25x1xf32> to vector<25x128xf32>
    %14 = arith.mulf %13, %12 : vector<25x128xf32>
    %15 = vector.broadcast %5 : vector<25x1xf32> to vector<25x128xf32>
    %16 = arith.addf %14, %15 : vector<25x128xf32>
    %cst_3 = arith.constant 5.000000e-01 : f32
    %17 = vector.broadcast %cst_3 : f32 to vector<25x128xf32>
    %18 = arith.mulf %17, %16 : vector<25x128xf32>
    %19 = math.tanh %18 : vector<25x128xf32>
    %cst_4 = arith.constant 1.000000e+00 : f32
    %20 = vector.broadcast %cst_4 : f32 to vector<25x128xf32>
    %21 = arith.addf %19, %20 : vector<25x128xf32>
    %cst_5 = arith.constant 5.000000e-01 : f32
    %22 = vector.broadcast %cst_5 : f32 to vector<25x128xf32>
    %23 = arith.mulf %22, %21 : vector<25x128xf32>
    %c0_6 = arith.constant 0 : index
    %c0_7 = arith.constant 0 : index
    %24 = vector.load %arg3[%c0_6, %c0_7] : memref<25x128xf32, #tpu.memory_space<vmem>>, vector<25x128xf32>
    tpu.vector_store %arg3[%c0_6, %c0_7], %23 {strides = array<i32>} : memref<25x128xf32, #tpu.memory_space<vmem>>, vector<25x128xf32>,
    return
  }
  func.func @transform_0(%arg0: i32) -> (i32, i32) {
    %c0_i32 = arith.constant 0 : i32
    %c0_i32_0 = arith.constant 0 : i32
    return %c0_i32, %arg0 : i32, i32
  }
  func.func @transform_1(%arg0: i32) -> (i32, i32) {
    %c0_i32 = arith.constant 0 : i32
    %c0_i32_0 = arith.constant 0 : i32
    %c0_i32_1 = arith.constant 0 : i32
    return %c0_i32, %c0_i32_0 : i32, i32
  }
  func.func @transform_2(%arg0: i32) -> (i32, i32) {
    %c0_i32 = arith.constant 0 : i32
    %c0_i32_0 = arith.constant 0 : i32
    return %c0_i32, %arg0 : i32, i32
  }
}

</mosaic_0001>

<llo_original>
// kernel: tpu_custom_call.1
$region0: #{tpu_custom_call.1}
  #allocation0 [shape = 'u32[]', space=smem, size = 0x4, offset = 0x4, fixed_abs, tag = 'smem constant byte address 0x4 - core index']
  #allocation1 [shape = 'u32[144,128]{1,0:T(1,128)}', space=vmem, size = 0x12000, scoped, tag = 'internal scratch']
  %s0 = inlined_call_operand.vmem [shape: f32[1,128], index: 0, kind: input, shape index: {}]
  %s1 = inlined_call_operand.vmem [shape: f32[25,4], index: 1, kind: input, shape index: {}]
  %s2 = inlined_call_operand.hbm [shape: f32[25,128], index: 2, kind: output, shape index: {}]
  %s3 = sld [smem:[#allocation0]]
  $region18: #{tpu_custom_call.1} parent=0
    _
  %s5 = ssub.s32 1, %s3
  %s6 = scalar_select 0, %s5, %s3
  $region1: #{tpu_custom_call.1} parent=0
    #allocation2 [shape = 'u8[16384]{0}', space=vmem, size = 0x4000, scoped, tag = 'output window, operand 0, single buffered']
    #allocation3 [shape = 's32[1]{0}', space=sflag, size = 0x4, scoped, tag = 'scoped memory for tpu_custom_call.1']
    %7 = vsyncpa [#allocation3], 0
    // Predicated region
    $region2: #{tpu_custom_call.1} parent=1 // pred_check
      _
    $region3: #{tpu_custom_call.1} parent=1 // pred_check_branch
      %9 = sbr.rel (0) target = $region5
    $region4: #{tpu_custom_call.1} parent=1 // pred_region
      _
    $region5: #{tpu_custom_call.1} parent=1 // pred_fallthru
      _
    // Predicated region
    $region6: #{tpu_custom_call.1} parent=1 // pred_check
      _
    $region7: #{tpu_custom_call.1} parent=1 // pred_check_branch
      %11 = sbr.rel (0) target = $region9
    $region8: #{tpu_custom_call.1} parent=1 // pred_region
      _
    $region9: #{tpu_custom_call.1} parent=1 // pred_fallthru
      _
    %v12 = vld [vmem:[%s0] sm:$0x1]
    %v13 = vld [vmem:[%s1] sm:$0xff]
    %v14 = vld [vmem:[%s1 + $0x8] sm:$0xff]
    %v15 = vld [vmem:[%s1 + $0x10] sm:$0xff]
    %v16 = vld [vmem:[%s1 + $0x18] sm:$0x1]
    %18 = vset.pattern.permute.xlu0 0
    %19 = vperm.xlu0 %18, %v13
    %v20 = vpop.permute.xlu0 %19
    %23 = vset.pattern.permute.xlu0 0
    %24 = vperm.xlu0 %23, %v14
    %v25 = vpop.permute.xlu0 %24
    %28 = vset.pattern.permute.xlu0 0
    %29 = vperm.xlu0 %28, %v15
    %v30 = vpop.permute.xlu0 %29
    %33 = vset.pattern.permute.xlu0 0
    %34 = vperm.xlu0 %33, %v16
    %v35 = vpop.permute.xlu0 %34
    %v38 = vlaneseq
    %v39 = vshrl.u32 %v38, 7
    %v40 = vsub.s32 0, %v39
    %v41 = vrot.slane %v12, %v40
    %v43 = vmul.f32 %v20, %v41
    %v44 = vmul.f32 %v25, %v41
    %v45 = vmul.f32 %v30, %v41
    %v46 = vmul.f32 %v35, %v41
    %47 = vset.pattern.permute.xlu0 1
    %48 = vperm.xlu0 %47, %v13
    %v49 = vpop.permute.xlu0 %48
    %51 = vset.pattern.permute.xlu0 1
    %52 = vperm.xlu0 %51, %v14
    %v53 = vpop.permute.xlu0 %52
    %55 = vset.pattern.permute.xlu0 1
    %56 = vperm.xlu0 %55, %v15
    %v57 = vpop.permute.xlu0 %56
    %59 = vset.pattern.permute.xlu0 1
    %60 = vperm.xlu0 %59, %v16
    %v61 = vpop.permute.xlu0 %60
    %v63 = vadd.f32 %v43, %v49
    %v64 = vadd.f32 %v44, %v53
    %v65 = vadd.f32 %v45, %v57
    %v66 = vadd.f32 %v46, %v61
    %v67 = vmax.f32 %v63, 0.0
    %v68 = vmax.f32 %v64, 0.0
    %v69 = vmax.f32 %v65, 0.0
    %v70 = vmax.f32 %v66, 0.0
    %71 = vset.pattern.permute.xlu0 2
    %72 = vperm.xlu0 %71, %v13
    %v73 = vpop.permute.xlu0 %72
    %75 = vset.pattern.permute.xlu0 2
    %76 = vperm.xlu0 %75, %v14
    %v77 = vpop.permute.xlu0 %76
    %79 = vset.pattern.permute.xlu0 2
    %80 = vperm.xlu0 %79, %v15
    %v81 = vpop.permute.xlu0 %80
    %83 = vset.pattern.permute.xlu0 2
    %84 = vperm.xlu0 %83, %v16
    %v85 = vpop.permute.xlu0 %84
    %v87 = vmul.f32 %v73, %v67
    %v88 = vmul.f32 %v77, %v68
    %v89 = vmul.f32 %v81, %v69
    %v90 = vmul.f32 %v85, %v70
    %91 = vset.pattern.permute.xlu0 3
    %92 = vperm.xlu0 %91, %v13
    %v93 = vpop.permute.xlu0 %92
    %95 = vset.pattern.permute.xlu0 3
    %96 = vperm.xlu0 %95, %v14
    %v97 = vpop.permute.xlu0 %96
    %99 = vset.pattern.permute.xlu0 3
    %100 = vperm.xlu0 %99, %v15
    %v101 = vpop.permute.xlu0 %100
    %103 = vset.pattern.permute.xlu0 3
    %104 = vperm.xlu0 %103, %v16
    %v105 = vpop.permute.xlu0 %104
    %v107 = vadd.f32 %v87, %v93
    %v108 = vadd.f32 %v88, %v97
    %v109 = vadd.f32 %v89, %v101
    %v110 = vadd.f32 %v90, %v105
    %v111 = vmul.f32 %v107, 0.5
    %v112 = vmul.f32 %v108, 0.5
    %v113 = vmul.f32 %v109, 0.5
    %v114 = vmul.f32 %v110, 0.5
    %v115 = vtanh.pop %v111
    %v116 = vtanh.pop %v112
    %v117 = vtanh.pop %v113
    %v118 = vtanh.pop %v114
    %v119 = vadd.f32 %v115, 1.0
    %v120 = vadd.f32 %v116, 1.0
    %v121 = vadd.f32 %v117, 1.0
    %v122 = vadd.f32 %v118, 1.0
    %v123 = vmul.f32 %v119, 0.5
    %v124 = vmul.f32 %v120, 0.5
    %v125 = vmul.f32 %v121, 0.5
    %v126 = vmul.f32 %v122, 0.5
    %127 = vst [vmem:[#allocation2] sm:$0xff] %v123
    %128 = vst [vmem:[#allocation2 + $0x8] sm:$0xff] %v124
    %129 = vst [vmem:[#allocation2 + $0x10] sm:$0xff] %v125
    %130 = vst [vmem:[#allocation2 + $0x18] sm:$0x1] %v126
    // Predicated region
    $region10: #{tpu_custom_call.1} parent=1 // pred_check
      _
    $region11: #{tpu_custom_call.1} parent=1 // pred_check_branch
      %132 = sbr.rel (0) target = $region13
    $region12: #{tpu_custom_call.1} parent=1 // pred_region
      %s134 = ssub.s32 512, 512
      %135 = vsyncadd [#allocation3], %s134
      %s136 = sshll.u32 [#allocation2], 4
      %s137 = int_to_ptr.vmem [resolvable:$true] %s136
      %142 = dma.vmem_to_hbm [thread:$0]  %s137, 512, %s2, [#allocation3], 128, 128, 8
    $region13: #{tpu_custom_call.1} parent=1 // pred_fallthru
      _
    // Predicated region
    $region14: #{tpu_custom_call.1} parent=1 // pred_check
      _
    $region15: #{tpu_custom_call.1} parent=1 // pred_check_branch
      %144 = sbr.rel (0) target = $region17
    $region16: #{tpu_custom_call.1} parent=1 // pred_region
      %145 = dma.done [#allocation3], 512
    $region17: #{tpu_custom_call.1} parent=1 // pred_fallthru
      _
    %146 = vsyncpa [#allocation3], 1

</llo_original>
